<compile_context>
chip_gen: v5e
topology: v5e:2x2
jax: 0.10.0
libtpu: 0.0.40
codegen_flags: <defaults>
</compile_context>

<pallas_src>
import jax
import jax.numpy as jnp
from jax.experimental import pallas as pl
from jax.experimental.pallas import tpu as pltpu


def _contrastive_kernel(
    temp_ref,      # SMEM (1,)    f32  temperature
    v_ref,         # VMEM (Tq, D) f32  streamed vision row tile
    t_ref,         # VMEM (B, D)  f32  resident raw text features
    out_ref,       # SMEM (8,)    f32  metrics (written at the last step)
    t_nb_ref,      # VMEM (B, D)  bf16 scratch: normalized text (MXU operand)
    col_se_ref,    # VMEM (1, B)  f32  scratch: sum_i exp(logits[i, j] - 1/T)
    col_max_ref,   # VMEM (1, B)  f32  scratch: running column max
    col_arg_ref,   # VMEM (1, B)  i32  scratch: running column argmax (global row)
    s_v2t_ref,     # VMEM (1, 1)  f32  scratch: sum_i (lse_row_i - diag_i)
    s_vcor_ref,    # VMEM (1, 1)  f32  scratch: v2t correct count
    s_mse_ref,     # VMEM (1, 1)  f32  scratch: sum of squared diffs (mse)
    s_diag_ref,    # VMEM (1, 1)  f32  scratch: sum of diagonal logits
    s_all_ref,     # VMEM (1, 1)  f32  scratch: sum of all logits
):
    i = pl.program_id(0)
    n_tiles = pl.num_programs(0)
    tq, d = v_ref.shape
    b = t_ref.shape[0]
    eps = 1e-12  # torch.nn.functional.normalize eps

    inv_temp = 1.0 / temp_ref[0]

    # ---- one-time init (first row tile): normalize resident text + zero accs.
    @pl.when(i == 0)
    def _init():
        t = t_ref[...].astype(jnp.float32)
        t_norm = jnp.sqrt(jnp.sum(t * t, axis=1, keepdims=True))
        t_n = t * (1.0 / jnp.maximum(t_norm, eps))
        t_nb_ref[...] = t_n.astype(jnp.bfloat16)
        col_se_ref[...] = jnp.zeros_like(col_se_ref)
        col_max_ref[...] = jnp.full_like(col_max_ref, -jnp.inf)
        col_arg_ref[...] = jnp.zeros_like(col_arg_ref)
        s_v2t_ref[...] = jnp.zeros_like(s_v2t_ref)
        s_vcor_ref[...] = jnp.zeros_like(s_vcor_ref)
        s_mse_ref[...] = jnp.zeros_like(s_mse_ref)
        s_diag_ref[...] = jnp.zeros_like(s_diag_ref)
        s_all_ref[...] = jnp.zeros_like(s_all_ref)

    # ---- current row tile ----------------------------------------------------
    row0 = i * tq                                   # global index of first row
    row_start = pl.multiple_of(row0, 8) if tq % 8 == 0 else row0

    v = v_ref[...].astype(jnp.float32)
    v_norm = jnp.sqrt(jnp.sum(v * v, axis=1, keepdims=True))
    v_n = v * (1.0 / jnp.maximum(v_norm, eps))
    v_nb = v_n.astype(jnp.bfloat16)

    # (Tq, B) logits tile on the MXU: bf16 operands, f32 accumulation.  The
    # ((1,),(1,)) contraction is the standard q @ k.T form; no pre-transposed
    # copy of the resident text is kept.
    logits = jax.lax.dot_general(
        v_nb, t_nb_ref[...], (((1,), (1,)), ((), ())),
        preferred_element_type=jnp.float32) * inv_temp

    # Aligned text rows (same global rows as this vision tile), kept f32.
    t_rows = t_ref[pl.ds(row_start, tq), :].astype(jnp.float32)
    t_rows_norm = jnp.sqrt(jnp.sum(t_rows * t_rows, axis=1, keepdims=True))
    t_rows_n = t_rows * (1.0 / jnp.maximum(t_rows_norm, eps))

    # Analytic diagonal: diag[i] = <v_n[i], t_n[i]> / T   (no eye mask, no BxB).
    diag = jnp.sum(v_n * t_rows_n, axis=1, keepdims=True) * inv_temp    # (Tq, 1)

    # MSE over matched (normalized) pairs; divided by B*D at the end.
    mse_part = jnp.sum((v_n - t_rows_n) ** 2, keepdims=True)            # (1, 1)

    # Single exp pass shared by both softmax directions (logits bounded by 1/T).
    p = jnp.exp(logits - inv_temp)                                      # (Tq, B)
    row_sum = jnp.sum(p, axis=1, keepdims=True)                         # (Tq, 1)
    lse_row = inv_temp + jnp.log(row_sum)                               # (Tq, 1)
    col_se_ref[...] += jnp.sum(p, axis=0, keepdims=True)                # (1, B)

    # Hoisted iotas, reused for both argmax directions and the finalize step.
    col_ids = jax.lax.broadcasted_iota(jnp.int32, (1, b), 1)            # (1, B)
    row_ids = jax.lax.broadcasted_iota(jnp.int32, (tq, 1), 0)           # (Tq, 1)

    # v2t accuracy: first-occurrence argmax over the full row (all B columns
    # of this row tile are resident).
    row_max = jnp.max(logits, axis=1, keepdims=True)                    # (Tq, 1)
    pred_col = jnp.min(jnp.where(logits == row_max, col_ids, b),
                       axis=1, keepdims=True)                           # (Tq, 1)
    v2t_correct = jnp.sum((pred_col == row_ids + row0).astype(jnp.float32),
                          keepdims=True)                                # (1, 1)

    # t2v accuracy: running (max, first-row-argmax) carried across row tiles.
    tile_cmax = jnp.max(logits, axis=0, keepdims=True)                  # (1, B)
    tile_carg = jnp.min(jnp.where(logits == tile_cmax, row_ids, tq),
                        axis=0, keepdims=True) + row0                   # (1, B)
    better = tile_cmax > col_max_ref[...]
    col_arg_ref[...] = jnp.where(better, tile_carg, col_arg_ref[...])
    col_max_ref[...] = jnp.maximum(tile_cmax, col_max_ref[...])

    # Scalar accumulators (kept as (1, 1) vectors; extracted only at the end).
    s_v2t_ref[...] += jnp.sum(lse_row - diag, keepdims=True)
    s_vcor_ref[...] += v2t_correct
    s_mse_ref[...] += mse_part
    s_diag_ref[...] += jnp.sum(diag, keepdims=True)
    s_all_ref[...] += jnp.sum(logits, keepdims=True)     # reuses the resident tile

    # ---- finalize: compute and store the 8 metrics at the last row tile ------
    @pl.when(i == n_tiles - 1)
    def _finalize():
        b_f = float(b)
        s_v2t = jnp.sum(s_v2t_ref[...])
        s_vcor = jnp.sum(s_vcor_ref[...])
        s_mse = jnp.sum(s_mse_ref[...])
        s_diag = jnp.sum(s_diag_ref[...])
        s_all = jnp.sum(s_all_ref[...])

        lse_col = inv_temp + jnp.log(col_se_ref[...])                   # (1, B)
        loss_v2t = s_v2t / b_f
        loss_t2v = (jnp.sum(lse_col) - s_diag) / b_f
        # Reference leaves mse at 0.0 when B == 1 (no valid pairs).
        mse_loss = s_mse / (b_f * float(d)) if b > 1 else s_mse * 0.0

        t2v_correct = jnp.sum((col_arg_ref[...] == col_ids).astype(jnp.float32))
        accuracy = 0.5 * (s_vcor + t2v_correct) / b_f

        pos_sim = s_diag / b_f
        if b > 1:
            neg_sim = (s_all - s_diag) / float(b * b - b)
        else:
            neg_sim = s_all * 0.0   # reference reports 0.0 when there are no negatives

        infonce = 0.5 * (loss_v2t + loss_t2v)
        total = infonce + 0.5 * mse_loss

        out_ref[0] = total
        out_ref[1] = infonce
        out_ref[2] = mse_loss
        out_ref[3] = loss_v2t
        out_ref[4] = loss_t2v
        out_ref[5] = accuracy
        out_ref[6] = pos_sim
        out_ref[7] = neg_sim


def _choose_row_tile(batch):
    """Largest sublane-aligned row tile that divides `batch` while keeping the
    live (tile, batch) f32 intermediates comfortably inside VMEM."""
    if batch <= 8 or batch % 8 != 0:
        return batch          # single-tile fallback (block == full array)
    cap = max(8, (24 * 1024 * 1024) // (6 * 4 * batch))
    for cand in (1024, 512, 256, 128, 64, 32, 16, 8):
        if cand <= cap and batch % cand == 0:
            return cand
    return batch


def simple_contrastive_loss(vision_features, text_features, match_ids=None,
                            temperature=0.1, decor_loss=0.0, row_tile=None):
    """Pallas TPU implementation of SimpleContrastiveLoss.forward
    (match_ids=None path).  Inputs: [batch, dim] float arrays."""
    if match_ids is not None:
        # TODO(synk): match_ids-driven positive masks use host-side RNG and
        # Python loops for random positive selection in the reference; only the
        # deterministic match_ids=None path is implemented as a kernel.
        raise NotImplementedError("match_ids is not supported by the Pallas kernel")

    assert vision_features.ndim == 2 and vision_features.shape == text_features.shape
    batch, dim = vision_features.shape

    tile = row_tile if row_tile is not None else _choose_row_tile(batch)
    assert batch % tile == 0 and (tile % 8 == 0 or tile == batch), (
        "row tile must divide the batch and be a multiple of 8 (or the full batch)")
    n_tiles = batch // tile

    temp_arr = jnp.asarray(temperature, dtype=jnp.float32).reshape((1,))

    # VMEM budget: resident raw text (f32) + normalized text (bf16) +
    # double-buffered vision tile + live (tile, batch) temporaries + accumulators.
    vmem_est = (batch * dim * 4 + batch * dim * 2 + 2 * tile * dim * 4
                + 8 * tile * batch * 4 + 16 * batch + (2 << 20))
    vmem_limit = int(min(max(vmem_est, 32 * 1024 * 1024), 64 * 1024 * 1024))

    metrics = pl.pallas_call(
        _contrastive_kernel,
        out_shape=jax.ShapeDtypeStruct((8,), jnp.float32),
        grid=(n_tiles,),
        in_specs=[
            pl.BlockSpec(memory_space=pltpu.MemorySpace.SMEM),     # temperature
            pl.BlockSpec((tile, dim), lambda i: (i, 0)),           # vision row tile
            pl.BlockSpec((batch, dim), lambda i: (0, 0)),          # resident text
        ],
        out_specs=pl.BlockSpec(memory_space=pltpu.MemorySpace.SMEM),
        scratch_shapes=[
            pltpu.VMEM((batch, dim), jnp.bfloat16),  # normalized text (MXU operand)
            pltpu.VMEM((1, batch), jnp.float32),     # column exp-sums
            pltpu.VMEM((1, batch), jnp.float32),     # column running max
            pltpu.VMEM((1, batch), jnp.int32),       # column running argmax
            pltpu.VMEM((1, 1), jnp.float32),         # sum(lse_row - diag)
            pltpu.VMEM((1, 1), jnp.float32),         # v2t correct count
            pltpu.VMEM((1, 1), jnp.float32),         # sum of squared diffs (mse)
            pltpu.VMEM((1, 1), jnp.float32),         # sum of diagonal logits
            pltpu.VMEM((1, 1), jnp.float32),         # sum of all logits
        ],
        compiler_params=pltpu.CompilerParams(
            # The row-tile axis carries the column accumulators -> sequential.
            # TODO(synk): on v7x, split this axis across the two TensorCores
            # with per-core column partials and a cross-core finalize reduce.
            dimension_semantics=("arbitrary",),
            vmem_limit_bytes=vmem_limit,
        ),
    )(temp_arr, vision_features, text_features)

    loss = metrics[0]
    if isinstance(decor_loss, jax.Array):
        loss = loss + 0.2 * decor_loss
        decor_out = decor_loss
    else:
        decor_out = 0.0

    pos_sim = metrics[6]
    neg_sim = metrics[7]
    return {
        "loss": loss,
        "infonce_loss": metrics[1],
        "mse_loss": metrics[2],
        "v2t_loss": metrics[3],
        "t2v_loss": metrics[4],
        "accuracy": metrics[5],
        "pos_sim": pos_sim,
        "neg_sim": neg_sim,
        "separation": pos_sim - neg_sim,
        "temperature": temperature,
        "decor_loss": decor_out,
    }


def _reference(vision, text, temperature):
    """Pure-JAX f32 reference for the match_ids=None path (for testing)."""
    eps = 1e-12
    v_n = vision / jnp.maximum(
        jnp.sqrt(jnp.sum(vision * vision, axis=1, keepdims=True)), eps)
    t_n = text / jnp.maximum(
        jnp.sqrt(jnp.sum(text * text, axis=1, keepdims=True)), eps)
    logits = (v_n @ t_n.T) / temperature
    b = vision.shape[0]
    diag = jnp.diag(logits)
    lse_r = jax.scipy.special.logsumexp(logits, axis=1)
    lse_c = jax.scipy.special.logsumexp(logits, axis=0)
    loss_v2t = jnp.mean(lse_r - diag)
    loss_t2v = jnp.mean(lse_c - diag)
    mse = jnp.mean((v_n - t_n) ** 2)
    infonce = 0.5 * (loss_v2t + loss_t2v)
    pos = jnp.mean(diag)
    neg = (jnp.sum(logits) - jnp.sum(diag)) / (b * b - b)
    return {
        "loss": infonce + 0.5 * mse, "infonce_loss": infonce, "mse_loss": mse,
        "v2t_loss": loss_v2t, "t2v_loss": loss_t2v,
        "pos_sim": pos, "neg_sim": neg,
    }


if __name__ == "__main__":
    key = jax.random.PRNGKey(0)
    k_v, k_t = jax.random.split(key)
    B, D = 16, 32
    vision = jax.random.normal(k_v, (B, D), dtype=jnp.float32)
    text = jax.random.normal(k_t, (B, D), dtype=jnp.float32)

    out = simple_contrastive_loss(vision, text, temperature=0.1)
    out = {k: (jax.block_until_ready(v) if isinstance(v, jax.Array) else v)
           for k, v in out.items()}

    # all outputs finite, accuracy sane
    vals = jnp.stack([out[k] for k in ("loss", "infonce_loss", "mse_loss",
                                       "v2t_loss", "t2v_loss", "accuracy",
                                       "pos_sim", "neg_sim", "separation")])
    assert bool(jnp.all(jnp.isfinite(vals))), "non-finite kernel output"
    assert 0.0 <= float(out["accuracy"]) <= 1.0, "accuracy out of range"

    # streaming (multi row-tile) path agrees with the single-tile path
    out_tiled = simple_contrastive_loss(vision, text, temperature=0.1, row_tile=8)
    for k in ("loss", "infonce_loss", "mse_loss", "v2t_loss", "t2v_loss",
              "accuracy", "pos_sim", "neg_sim"):
        a, c = float(out[k]), float(out_tiled[k])
        assert abs(a - c) < 1e-4, f"tiled/untiled mismatch for {k}: {a} vs {c}"

    # agrees with a pure-JAX f32 reference (bf16 MXU operands -> loose tolerance)
    ref = _reference(vision, text, 0.1)
    for k, r in ref.items():
        a, r = float(out[k]), float(r)
        assert abs(a - r) <= 0.1 + 0.02 * abs(r), \
            f"reference mismatch for {k}: {a} vs {r}"

    print("KERNEL_OK")
</pallas_src>

<mosaic_0001>
module attributes {stable_mosaic.version = 11 : i64} {
  func.func @_contrastive_kernel(%arg0: i32, %arg1: memref<1xf32, #tpu.memory_space<smem>>, %arg2: memref<16x32xf32, #tpu.memory_space<vmem>>, %arg3: memref<16x32xf32, #tpu.memory_space<vmem>>, %arg4: memref<8xf32, #tpu.memory_space<smem>>, %arg5: memref<16x32xbf16, #tpu.memory_space<vmem>>, %arg6: memref<1x16xf32, #tpu.memory_space<vmem>>, %arg7: memref<1x16xf32, #tpu.memory_space<vmem>>, %arg8: memref<1x16xi32, #tpu.memory_space<vmem>>, %arg9: memref<1x1xf32, #tpu.memory_space<vmem>>, %arg10: memref<1x1xf32, #tpu.memory_space<vmem>>, %arg11: memref<1x1xf32, #tpu.memory_space<vmem>>, %arg12: memref<1x1xf32, #tpu.memory_space<vmem>>, %arg13: memref<1x1xf32, #tpu.memory_space<vmem>>) attributes {dimension_semantics = [#tpu.dimension_semantics<arbitrary>], iteration_bounds = array<i64: 1>, scalar_prefetch = 0 : i64, scratch_operands = 9 : i64, tpu.core_type = #tpu.core_type<tc>, window_params = [{transform_indices = @transform_0, window_bounds = array<i64: 1>}, {transform_indices = @transform_1, window_bounds = array<i64: 16, 32>}, {pipeline_mode = #tpu.pipeline_mode<synchronous>, transform_indices = @transform_2, window_bounds = array<i64: 16, 32>}, {transform_indices = @transform_3, window_bounds = array<i64: 8>}]} {
    %c0 = arith.constant 0 : index
    %0 = memref.load %arg1[%c0] : memref<1xf32, #tpu.memory_space<smem>>
    %cst = arith.constant 1.000000e+00 : f32
    %1 = arith.divf %cst, %0 : f32
    %c0_i32 = arith.constant 0 : i32
    %2 = arith.cmpi eq, %arg0, %c0_i32 : i32
    %3 = arith.extui %2 : i1 to i32
    %c0_i32_0 = arith.constant 0 : i32
    %4 = arith.cmpi ne, %3, %c0_i32_0 : i32
    scf.if %4 {
      %c0_63 = arith.constant 0 : index
      %c0_64 = arith.constant 0 : index
      %136 = vector.load %arg3[%c0_63, %c0_64] : memref<16x32xf32, #tpu.memory_space<vmem>>, vector<16x32xf32>
      %137 = arith.mulf %136, %136 : vector<16x32xf32>
      %cst_65 = arith.constant dense<0.000000e+00> : vector<16xf32>
      %138 = vector.multi_reduction <add>, %137, %cst_65 [1] : vector<16x32xf32> to vector<16xf32>
      %139 = vector.shape_cast %138 : vector<16xf32> to vector<16x1xf32>
      %140 = math.sqrt %139 : vector<16x1xf32>
      %cst_66 = arith.constant 9.99999996E-13 : f32
      %141 = vector.broadcast %cst_66 : f32 to vector<16x1xf32>
      %142 = arith.maximumf %140, %141 : vector<16x1xf32>
      %cst_67 = arith.constant 1.000000e+00 : f32
      %143 = vector.broadcast %cst_67 : f32 to vector<16x1xf32>
      %144 = arith.divf %143, %142 : vector<16x1xf32>
      %145 = vector.broadcast %144 : vector<16x1xf32> to vector<16x32xf32>
      %146 = arith.mulf %136, %145 : vector<16x32xf32>
      %147 = arith.truncf %146 : vector<16x32xf32> to vector<16x32xbf16>
      %c0_68 = arith.constant 0 : index
      %c0_69 = arith.constant 0 : index
      %148 = vector.load %arg5[%c0_68, %c0_69] : memref<16x32xbf16, #tpu.memory_space<vmem>>, vector<16x32xbf16>
      tpu.vector_store %arg5[%c0_68, %c0_69], %147 {strides = array<i32>} : memref<16x32xbf16, #tpu.memory_space<vmem>>, vector<16x32xbf16>,
      %cst_70 = arith.constant 0.000000e+00 : f32
      %149 = vector.broadcast %cst_70 : f32 to vector<1x16xf32>
      %c0_71 = arith.constant 0 : index
      %c0_72 = arith.constant 0 : index
      %150 = vector.load %arg6[%c0_71, %c0_72] : memref<1x16xf32, #tpu.memory_space<vmem>>, vector<1x16xf32>
      tpu.vector_store %arg6[%c0_71, %c0_72], %149 {strides = array<i32>} : memref<1x16xf32, #tpu.memory_space<vmem>>, vector<1x16xf32>,
      %cst_73 = arith.constant 0xFF800000 : f32
      %151 = vector.broadcast %cst_73 : f32 to vector<1x16xf32>
      %c0_74 = arith.constant 0 : index
      %c0_75 = arith.constant 0 : index
      %152 = vector.load %arg7[%c0_74, %c0_75] : memref<1x16xf32, #tpu.memory_space<vmem>>, vector<1x16xf32>
      tpu.vector_store %arg7[%c0_74, %c0_75], %151 {strides = array<i32>} : memref<1x16xf32, #tpu.memory_space<vmem>>, vector<1x16xf32>,
      %c0_i32_76 = arith.constant 0 : i32
      %153 = vector.broadcast %c0_i32_76 : i32 to vector<1x16xi32>
      %c0_77 = arith.constant 0 : index
      %c0_78 = arith.constant 0 : index
      %154 = vector.load %arg8[%c0_77, %c0_78] : memref<1x16xi32, #tpu.memory_space<vmem>>, vector<1x16xi32>
      tpu.vector_store %arg8[%c0_77, %c0_78], %153 {strides = array<i32>} : memref<1x16xi32, #tpu.memory_space<vmem>>, vector<1x16xi32>,
      %cst_79 = arith.constant 0.000000e+00 : f32
      %155 = vector.broadcast %cst_79 : f32 to vector<1x1xf32>
      %c0_80 = arith.constant 0 : index
      %c0_81 = arith.constant 0 : index
      %156 = vector.load %arg9[%c0_80, %c0_81] : memref<1x1xf32, #tpu.memory_space<vmem>>, vector<1x1xf32>
      tpu.vector_store %arg9[%c0_80, %c0_81], %155 {strides = array<i32>} : memref<1x1xf32, #tpu.memory_space<vmem>>, vector<1x1xf32>,
      %cst_82 = arith.constant 0.000000e+00 : f32
      %157 = vector.broadcast %cst_82 : f32 to vector<1x1xf32>
      %c0_83 = arith.constant 0 : index
      %c0_84 = arith.constant 0 : index
      %158 = vector.load %arg10[%c0_83, %c0_84] : memref<1x1xf32, #tpu.memory_space<vmem>>, vector<1x1xf32>
      tpu.vector_store %arg10[%c0_83, %c0_84], %157 {strides = array<i32>} : memref<1x1xf32, #tpu.memory_space<vmem>>, vector<1x1xf32>,
      %cst_85 = arith.constant 0.000000e+00 : f32
      %159 = vector.broadcast %cst_85 : f32 to vector<1x1xf32>
      %c0_86 = arith.constant 0 : index
      %c0_87 = arith.constant 0 : index
      %160 = vector.load %arg11[%c0_86, %c0_87] : memref<1x1xf32, #tpu.memory_space<vmem>>, vector<1x1xf32>
      tpu.vector_store %arg11[%c0_86, %c0_87], %159 {strides = array<i32>} : memref<1x1xf32, #tpu.memory_space<vmem>>, vector<1x1xf32>,
      %cst_88 = arith.constant 0.000000e+00 : f32
      %161 = vector.broadcast %cst_88 : f32 to vector<1x1xf32>
      %c0_89 = arith.constant 0 : index
      %c0_90 = arith.constant 0 : index
      %162 = vector.load %arg12[%c0_89, %c0_90] : memref<1x1xf32, #tpu.memory_space<vmem>>, vector<1x1xf32>
      tpu.vector_store %arg12[%c0_89, %c0_90], %161 {strides = array<i32>} : memref<1x1xf32, #tpu.memory_space<vmem>>, vector<1x1xf32>,
      %cst_91 = arith.constant 0.000000e+00 : f32
      %163 = vector.broadcast %cst_91 : f32 to vector<1x1xf32>
      %c0_92 = arith.constant 0 : index
      %c0_93 = arith.constant 0 : index
      %164 = vector.load %arg13[%c0_92, %c0_93] : memref<1x1xf32, #tpu.memory_space<vmem>>, vector<1x1xf32>
      tpu.vector_store %arg13[%c0_92, %c0_93], %163 {strides = array<i32>} : memref<1x1xf32, #tpu.memory_space<vmem>>, vector<1x1xf32>,
    } else {
    }
    %c16_i32 = arith.constant 16 : i32
    %5 = arith.muli %arg0, %c16_i32 : i32
    %6 = tpu.assume_multiple %5, 8 : i32
    %c0_1 = arith.constant 0 : index
    %c0_2 = arith.constant 0 : index
    %7 = vector.load %arg2[%c0_1, %c0_2] : memref<16x32xf32, #tpu.memory_space<vmem>>, vector<16x32xf32>
    %8 = arith.mulf %7, %7 : vector<16x32xf32>
    %cst_3 = arith.constant dense<0.000000e+00> : vector<16xf32>
    %9 = vector.multi_reduction <add>, %8, %cst_3 [1] : vector<16x32xf32> to vector<16xf32>
    %10 = vector.shape_cast %9 : vector<16xf32> to vector<16x1xf32>
    %11 = math.sqrt %10 : vector<16x1xf32>
    %cst_4 = arith.constant 9.99999996E-13 : f32
    %12 = vector.broadcast %cst_4 : f32 to vector<16x1xf32>
    %13 = arith.maximumf %11, %12 : vector<16x1xf32>
    %cst_5 = arith.constant 1.000000e+00 : f32
    %14 = vector.broadcast %cst_5 : f32 to vector<16x1xf32>
    %15 = arith.divf %14, %13 : vector<16x1xf32>
    %16 = vector.broadcast %15 : vector<16x1xf32> to vector<16x32xf32>
    %17 = arith.mulf %7, %16 : vector<16x32xf32>
    %18 = arith.truncf %17 : vector<16x32xf32> to vector<16x32xbf16>
    %c0_6 = arith.constant 0 : index
    %c0_7 = arith.constant 0 : index
    %19 = vector.load %arg5[%c0_6, %c0_7] : memref<16x32xbf16, #tpu.memory_space<vmem>>, vector<16x32xbf16>
    %cst_8 = arith.constant dense<0.000000e+00> : vector<16x16xf32>
    %20 = tpu.matmul %18, %19, %cst_8 {dimension_numbers = #tpu.dot_dimension_numbers<[1], [1], [0], [0], [0, 0, 1, 0], [], []>} : vector<16x32xbf16>, vector<16x32xbf16>, vector<16x16xf32> -> vector<16x16xf32>
    %21 = vector.broadcast %1 : f32 to vector<16x16xf32>
    %22 = arith.mulf %20, %21 : vector<16x16xf32>
    %23 = arith.index_cast %6 : i32 to index
    %c0_9 = arith.constant 0 : index
    %24 = vector.load %arg3[%23, %c0_9] : memref<16x32xf32, #tpu.memory_space<vmem>>, vector<16x32xf32>
    %25 = arith.mulf %24, %24 : vector<16x32xf32>
    %cst_10 = arith.constant dense<0.000000e+00> : vector<16xf32>
    %26 = vector.multi_reduction <add>, %25, %cst_10 [1] : vector<16x32xf32> to vector<16xf32>
    %27 = vector.shape_cast %26 : vector<16xf32> to vector<16x1xf32>
    %28 = math.sqrt %27 : vector<16x1xf32>
    %cst_11 = arith.constant 9.99999996E-13 : f32
    %29 = vector.broadcast %cst_11 : f32 to vector<16x1xf32>
    %30 = arith.maximumf %28, %29 : vector<16x1xf32>
    %cst_12 = arith.constant 1.000000e+00 : f32
    %31 = vector.broadcast %cst_12 : f32 to vector<16x1xf32>
    %32 = arith.divf %31, %30 : vector<16x1xf32>
    %33 = vector.broadcast %32 : vector<16x1xf32> to vector<16x32xf32>
    %34 = arith.mulf %24, %33 : vector<16x32xf32>
    %35 = arith.mulf %17, %34 : vector<16x32xf32>
    %cst_13 = arith.constant dense<0.000000e+00> : vector<16xf32>
    %36 = vector.multi_reduction <add>, %35, %cst_13 [1] : vector<16x32xf32> to vector<16xf32>
    %37 = vector.shape_cast %36 : vector<16xf32> to vector<16x1xf32>
    %38 = vector.broadcast %1 : f32 to vector<16x1xf32>
    %39 = arith.mulf %37, %38 : vector<16x1xf32>
    %40 = arith.subf %17, %34 : vector<16x32xf32>
    %41 = arith.mulf %40, %40 : vector<16x32xf32>
    %42 = vector.shape_cast %41 : vector<16x32xf32> to vector<1x16x32xf32>
    %cst_14 = arith.constant dense<0.000000e+00> : vector<1xf32>
    %43 = vector.multi_reduction <add>, %42, %cst_14 [1, 2] : vector<1x16x32xf32> to vector<1xf32>
    %44 = vector.shape_cast %43 : vector<1xf32> to vector<1x1x1xf32>
    %45 = vector.extract %44[0, 0, 0] : f32 from vector<1x1x1xf32>
    %46 = vector.broadcast %45 : f32 to vector<1x1xf32>
    %47 = vector.broadcast %1 : f32 to vector<16x16xf32>
    %48 = arith.subf %22, %47 : vector<16x16xf32>
    %49 = math.exp %48 : vector<16x16xf32>
    %cst_15 = arith.constant dense<0.000000e+00> : vector<16xf32>
    %50 = vector.multi_reduction <add>, %49, %cst_15 [1] : vector<16x16xf32> to vector<16xf32>
    %51 = vector.shape_cast %50 : vector<16xf32> to vector<16x1xf32>
    %52 = math.log %51 : vector<16x1xf32>
    %53 = vector.broadcast %1 : f32 to vector<16x1xf32>
    %54 = arith.addf %53, %52 : vector<16x1xf32>
    %c0_16 = arith.constant 0 : index
    %c0_17 = arith.constant 0 : index
    %55 = vector.load %arg6[%c0_16, %c0_17] : memref<1x16xf32, #tpu.memory_space<vmem>>, vector<1x16xf32>
    %cst_18 = arith.constant dense<0.000000e+00> : vector<16xf32>
    %56 = vector.multi_reduction <add>, %49, %cst_18 [0] : vector<16x16xf32> to vector<16xf32>
    %57 = vector.shape_cast %56 : vector<16xf32> to vector<1x16xf32>
    %58 = arith.addf %55, %57 : vector<1x16xf32>
    %c0_19 = arith.constant 0 : index
    %c0_20 = arith.constant 0 : index
    %59 = vector.load %arg6[%c0_19, %c0_20] : memref<1x16xf32, #tpu.memory_space<vmem>>, vector<1x16xf32>
    tpu.vector_store %arg6[%c0_19, %c0_20], %58 {strides = array<i32>} : memref<1x16xf32, #tpu.memory_space<vmem>>, vector<1x16xf32>,
    %60 = tpu.iota {dimensions = array<i32: 1>} : vector<1x16xi32>
    %61 = tpu.iota {dimensions = array<i32: 0>} : vector<16x1xi32>
    %cst_21 = arith.constant dense<0xFF800000> : vector<16xf32>
    %62 = vector.multi_reduction <maximumf>, %22, %cst_21 [1] : vector<16x16xf32> to vector<16xf32>
    %63 = vector.shape_cast %62 : vector<16xf32> to vector<16x1xf32>
    %64 = vector.broadcast %63 : vector<16x1xf32> to vector<16x16xf32>
    %65 = arith.cmpf oeq, %22, %64 : vector<16x16xf32>
    %c16_i32_22 = arith.constant 16 : i32
    %66 = vector.shape_cast %60 : vector<1x16xi32> to vector<1x16xi32>
    %67 = vector.broadcast %66 : vector<1x16xi32> to vector<16x16xi32>
    %68 = vector.broadcast %c16_i32_22 : i32 to vector<16x16xi32>
    %69 = arith.select %65, %67, %68 : vector<16x16xi1>, vector<16x16xi32>
    %cst_23 = arith.constant dense<2147483647> : vector<16xi32>
    %70 = vector.multi_reduction <minsi>, %69, %cst_23 [1] : vector<16x16xi32> to vector<16xi32>
    %71 = vector.shape_cast %70 : vector<16xi32> to vector<16x1xi32>
    %72 = vector.broadcast %5 : i32 to vector<16x1xi32>
    %73 = arith.addi %61, %72 : vector<16x1xi32>
    %74 = arith.cmpi eq, %71, %73 : vector<16x1xi32>
    %75 = arith.extui %74 : vector<16x1xi1> to vector<16x1xi32>
    %76 = arith.sitofp %75 : vector<16x1xi32> to vector<16x1xf32>
    %77 = vector.shape_cast %76 : vector<16x1xf32> to vector<1x16x1xf32>
    %cst_24 = arith.constant dense<0.000000e+00> : vector<1xf32>
    %78 = vector.multi_reduction <add>, %77, %cst_24 [1, 2] : vector<1x16x1xf32> to vector<1xf32>
    %79 = vector.shape_cast %78 : vector<1xf32> to vector<1x1x1xf32>
    %80 = vector.extract %79[0, 0, 0] : f32 from vector<1x1x1xf32>
    %81 = vector.broadcast %80 : f32 to vector<1x1xf32>
    %cst_25 = arith.constant dense<0xFF800000> : vector<16xf32>
    %82 = vector.multi_reduction <maximumf>, %22, %cst_25 [0] : vector<16x16xf32> to vector<16xf32>
    %83 = vector.shape_cast %82 : vector<16xf32> to vector<1x16xf32>
    %84 = vector.broadcast %83 : vector<1x16xf32> to vector<16x16xf32>
    %85 = arith.cmpf oeq, %22, %84 : vector<16x16xf32>
    %c16_i32_26 = arith.constant 16 : i32
    %86 = vector.shape_cast %61 : vector<16x1xi32> to vector<16x1xi32>
    %87 = vector.broadcast %86 : vector<16x1xi32> to vector<16x16xi32>
    %88 = vector.broadcast %c16_i32_26 : i32 to vector<16x16xi32>
    %89 = arith.select %85, %87, %88 : vector<16x16xi1>, vector<16x16xi32>
    %cst_27 = arith.constant dense<2147483647> : vector<16xi32>
    %90 = vector.multi_reduction <minsi>, %89, %cst_27 [0] : vector<16x16xi32> to vector<16xi32>
    %91 = vector.shape_cast %90 : vector<16xi32> to vector<1x16xi32>
    %92 = vector.broadcast %5 : i32 to vector<1x16xi32>
    %93 = arith.addi %91, %92 : vector<1x16xi32>
    %c0_28 = arith.constant 0 : index
    %c0_29 = arith.constant 0 : index
    %94 = vector.load %arg7[%c0_28, %c0_29] : memref<1x16xf32, #tpu.memory_space<vmem>>, vector<1x16xf32>
    %95 = arith.cmpf ogt, %83, %94 : vector<1x16xf32>
    %c0_30 = arith.constant 0 : index
    %c0_31 = arith.constant 0 : index
    %96 = vector.load %arg8[%c0_30, %c0_31] : memref<1x16xi32, #tpu.memory_space<vmem>>, vector<1x16xi32>
    %97 = arith.select %95, %93, %96 : vector<1x16xi1>, vector<1x16xi32>
    %c0_32 = arith.constant 0 : index
    %c0_33 = arith.constant 0 : index
    %98 = vector.load %arg8[%c0_32, %c0_33] : memref<1x16xi32, #tpu.memory_space<vmem>>, vector<1x16xi32>
    tpu.vector_store %arg8[%c0_32, %c0_33], %97 {strides = array<i32>} : memref<1x16xi32, #tpu.memory_space<vmem>>, vector<1x16xi32>,
    %c0_34 = arith.constant 0 : index
    %c0_35 = arith.constant 0 : index
    %99 = vector.load %arg7[%c0_34, %c0_35] : memref<1x16xf32, #tpu.memory_space<vmem>>, vector<1x16xf32>
    %100 = arith.maximumf %83, %99 : vector<1x16xf32>
    %c0_36 = arith.constant 0 : index
    %c0_37 = arith.constant 0 : index
    %101 = vector.load %arg7[%c0_36, %c0_37] : memref<1x16xf32, #tpu.memory_space<vmem>>, vector<1x16xf32>
    tpu.vector_store %arg7[%c0_36, %c0_37], %100 {strides = array<i32>} : memref<1x16xf32, #tpu.memory_space<vmem>>, vector<1x16xf32>,
    %c0_38 = arith.constant 0 : index
    %c0_39 = arith.constant 0 : index
    %102 = vector.load %arg9[%c0_38, %c0_39] : memref<1x1xf32, #tpu.memory_space<vmem>>, vector<1x1xf32>
    %103 = arith.subf %54, %39 : vector<16x1xf32>
    %104 = vector.shape_cast %103 : vector<16x1xf32> to vector<1x16x1xf32>
    %cst_40 = arith.constant dense<0.000000e+00> : vector<1xf32>
    %105 = vector.multi_reduction <add>, %104, %cst_40 [1, 2] : vector<1x16x1xf32> to vector<1xf32>
    %106 = vector.shape_cast %105 : vector<1xf32> to vector<1x1x1xf32>
    %107 = vector.extract %106[0, 0, 0] : f32 from vector<1x1x1xf32>
    %108 = vector.broadcast %107 : f32 to vector<1x1xf32>
    %109 = arith.addf %102, %108 : vector<1x1xf32>
    %c0_41 = arith.constant 0 : index
    %c0_42 = arith.constant 0 : index
    %110 = vector.load %arg9[%c0_41, %c0_42] : memref<1x1xf32, #tpu.memory_space<vmem>>, vector<1x1xf32>
    tpu.vector_store %arg9[%c0_41, %c0_42], %109 {strides = array<i32>} : memref<1x1xf32, #tpu.memory_space<vmem>>, vector<1x1xf32>,
    %c0_43 = arith.constant 0 : index
    %c0_44 = arith.constant 0 : index
    %111 = vector.load %arg10[%c0_43, %c0_44] : memref<1x1xf32, #tpu.memory_space<vmem>>, vector<1x1xf32>
    %112 = arith.addf %111, %81 : vector<1x1xf32>
    %c0_45 = arith.constant 0 : index
    %c0_46 = arith.constant 0 : index
    %113 = vector.load %arg10[%c0_45, %c0_46] : memref<1x1xf32, #tpu.memory_space<vmem>>, vector<1x1xf32>
    tpu.vector_store %arg10[%c0_45, %c0_46], %112 {strides = array<i32>} : memref<1x1xf32, #tpu.memory_space<vmem>>, vector<1x1xf32>,
    %c0_47 = arith.constant 0 : index
    %c0_48 = arith.constant 0 : index
    %114 = vector.load %arg11[%c0_47, %c0_48] : memref<1x1xf32, #tpu.memory_space<vmem>>, vector<1x1xf32>
    %115 = arith.addf %114, %46 : vector<1x1xf32>
    %c0_49 = arith.constant 0 : index
    %c0_50 = arith.constant 0 : index
    %116 = vector.load %arg11[%c0_49, %c0_50] : memref<1x1xf32, #tpu.memory_space<vmem>>, vector<1x1xf32>
    tpu.vector_store %arg11[%c0_49, %c0_50], %115 {strides = array<i32>} : memref<1x1xf32, #tpu.memory_space<vmem>>, vector<1x1xf32>,
    %c0_51 = arith.constant 0 : index
    %c0_52 = arith.constant 0 : index
    %117 = vector.load %arg12[%c0_51, %c0_52] : memref<1x1xf32, #tpu.memory_space<vmem>>, vector<1x1xf32>
    %118 = vector.shape_cast %39 : vector<16x1xf32> to vector<1x16x1xf32>
    %cst_53 = arith.constant dense<0.000000e+00> : vector<1xf32>
    %119 = vector.multi_reduction <add>, %118, %cst_53 [1, 2] : vector<1x16x1xf32> to vector<1xf32>
    %120 = vector.shape_cast %119 : vector<1xf32> to vector<1x1x1xf32>
    %121 = vector.extract %120[0, 0, 0] : f32 from vector<1x1x1xf32>
    %122 = vector.broadcast %121 : f32 to vector<1x1xf32>
    %123 = arith.addf %117, %122 : vector<1x1xf32>
    %c0_54 = arith.constant 0 : index
    %c0_55 = arith.constant 0 : index
    %124 = vector.load %arg12[%c0_54, %c0_55] : memref<1x1xf32, #tpu.memory_space<vmem>>, vector<1x1xf32>
    tpu.vector_store %arg12[%c0_54, %c0_55], %123 {strides = array<i32>} : memref<1x1xf32, #tpu.memory_space<vmem>>, vector<1x1xf32>,
    %c0_56 = arith.constant 0 : index
    %c0_57 = arith.constant 0 : index
    %125 = vector.load %arg13[%c0_56, %c0_57] : memref<1x1xf32, #tpu.memory_space<vmem>>, vector<1x1xf32>
    %126 = vector.shape_cast %22 : vector<16x16xf32> to vector<1x16x16xf32>
    %cst_58 = arith.constant dense<0.000000e+00> : vector<1xf32>
    %127 = vector.multi_reduction <add>, %126, %cst_58 [1, 2] : vector<1x16x16xf32> to vector<1xf32>
    %128 = vector.shape_cast %127 : vector<1xf32> to vector<1x1x1xf32>
    %129 = vector.extract %128[0, 0, 0] : f32 from vector<1x1x1xf32>
    %130 = vector.broadcast %129 : f32 to vector<1x1xf32>
    %131 = arith.addf %125, %130 : vector<1x1xf32>
    %c0_59 = arith.constant 0 : index
    %c0_60 = arith.constant 0 : index
    %132 = vector.load %arg13[%c0_59, %c0_60] : memref<1x1xf32, #tpu.memory_space<vmem>>, vector<1x1xf32>
    tpu.vector_store %arg13[%c0_59, %c0_60], %131 {strides = array<i32>} : memref<1x1xf32, #tpu.memory_space<vmem>>, vector<1x1xf32>,
    %c0_i32_61 = arith.constant 0 : i32
    %133 = arith.cmpi eq, %arg0, %c0_i32_61 : i32
    %134 = arith.extui %133 : i1 to i32
    %c0_i32_62 = arith.constant 0 : i32
    %135 = arith.cmpi ne, %134, %c0_i32_62 : i32
    scf.if %135 {
      %c0_63 = arith.constant 0 : index
      %c0_64 = arith.constant 0 : index
      %136 = vector.load %arg9[%c0_63, %c0_64] : memref<1x1xf32, #tpu.memory_space<vmem>>, vector<1x1xf32>
      %137 = vector.shape_cast %136 : vector<1x1xf32> to vector<1x1x1xf32>
      %cst_65 = arith.constant dense<0.000000e+00> : vector<1xf32>
      %138 = vector.multi_reduction <add>, %137, %cst_65 [1, 2] : vector<1x1x1xf32> to vector<1xf32>
      %139 = vector.shape_cast %138 : vector<1xf32> to vector<1x1x1xf32>
      %140 = vector.extract %139[0, 0, 0] : f32 from vector<1x1x1xf32>
      %c0_66 = arith.constant 0 : index
      %c0_67 = arith.constant 0 : index
      %141 = vector.load %arg10[%c0_66, %c0_67] : memref<1x1xf32, #tpu.memory_space<vmem>>, vector<1x1xf32>
      %142 = vector.shape_cast %141 : vector<1x1xf32> to vector<1x1x1xf32>
      %cst_68 = arith.constant dense<0.000000e+00> : vector<1xf32>
      %143 = vector.multi_reduction <add>, %142, %cst_68 [1, 2] : vector<1x1x1xf32> to vector<1xf32>
      %144 = vector.shape_cast %143 : vector<1xf32> to vector<1x1x1xf32>
      %145 = vector.extract %144[0, 0, 0] : f32 from vector<1x1x1xf32>
      %c0_69 = arith.constant 0 : index
      %c0_70 = arith.constant 0 : index
      %146 = vector.load %arg11[%c0_69, %c0_70] : memref<1x1xf32, #tpu.memory_space<vmem>>, vector<1x1xf32>
      %147 = vector.shape_cast %146 : vector<1x1xf32> to vector<1x1x1xf32>
      %cst_71 = arith.constant dense<0.000000e+00> : vector<1xf32>
      %148 = vector.multi_reduction <add>, %147, %cst_71 [1, 2] : vector<1x1x1xf32> to vector<1xf32>
      %149 = vector.shape_cast %148 : vector<1xf32> to vector<1x1x1xf32>
      %150 = vector.extract %149[0, 0, 0] : f32 from vector<1x1x1xf32>
      %c0_72 = arith.constant 0 : index
      %c0_73 = arith.constant 0 : index
      %151 = vector.load %arg12[%c0_72, %c0_73] : memref<1x1xf32, #tpu.memory_space<vmem>>, vector<1x1xf32>
      %152 = vector.shape_cast %151 : vector<1x1xf32> to vector<1x1x1xf32>
      %cst_74 = arith.constant dense<0.000000e+00> : vector<1xf32>
      %153 = vector.multi_reduction <add>, %152, %cst_74 [1, 2] : vector<1x1x1xf32> to vector<1xf32>
      %154 = vector.shape_cast %153 : vector<1xf32> to vector<1x1x1xf32>
      %155 = vector.extract %154[0, 0, 0] : f32 from vector<1x1x1xf32>
      %c0_75 = arith.constant 0 : index
      %c0_76 = arith.constant 0 : index
      %156 = vector.load %arg13[%c0_75, %c0_76] : memref<1x1xf32, #tpu.memory_space<vmem>>, vector<1x1xf32>
      %157 = vector.shape_cast %156 : vector<1x1xf32> to vector<1x1x1xf32>
      %cst_77 = arith.constant dense<0.000000e+00> : vector<1xf32>
      %158 = vector.multi_reduction <add>, %157, %cst_77 [1, 2] : vector<1x1x1xf32> to vector<1xf32>
      %159 = vector.shape_cast %158 : vector<1xf32> to vector<1x1x1xf32>
      %160 = vector.extract %159[0, 0, 0] : f32 from vector<1x1x1xf32>
      %c0_78 = arith.constant 0 : index
      %c0_79 = arith.constant 0 : index
      %161 = vector.load %arg6[%c0_78, %c0_79] : memref<1x16xf32, #tpu.memory_space<vmem>>, vector<1x16xf32>
      %162 = math.log %161 : vector<1x16xf32>
      %163 = vector.broadcast %1 : f32 to vector<1x16xf32>
      %164 = arith.addf %163, %162 : vector<1x16xf32>
      %cst_80 = arith.constant 1.600000e+01 : f32
      %165 = arith.divf %140, %cst_80 : f32
      %166 = vector.shape_cast %164 : vector<1x16xf32> to vector<1x1x16xf32>
      %cst_81 = arith.constant dense<0.000000e+00> : vector<1xf32>
      %167 = vector.multi_reduction <add>, %166, %cst_81 [1, 2] : vector<1x1x16xf32> to vector<1xf32>
      %168 = vector.shape_cast %167 : vector<1xf32> to vector<1x1x1xf32>
      %169 = vector.extract %168[0, 0, 0] : f32 from vector<1x1x1xf32>
      %170 = arith.subf %169, %155 : f32
      %cst_82 = arith.constant 1.600000e+01 : f32
      %171 = arith.divf %170, %cst_82 : f32
      %cst_83 = arith.constant 5.120000e+02 : f32
      %172 = arith.divf %150, %cst_83 : f32
      %c0_84 = arith.constant 0 : index
      %c0_85 = arith.constant 0 : index
      %173 = vector.load %arg8[%c0_84, %c0_85] : memref<1x16xi32, #tpu.memory_space<vmem>>, vector<1x16xi32>
      %174 = arith.cmpi eq, %173, %60 : vector<1x16xi32>
      %175 = arith.extui %174 : vector<1x16xi1> to vector<1x16xi32>
      %176 = arith.sitofp %175 : vector<1x16xi32> to vector<1x16xf32>
      %177 = vector.shape_cast %176 : vector<1x16xf32> to vector<1x1x16xf32>
      %cst_86 = arith.constant dense<0.000000e+00> : vector<1xf32>
      %178 = vector.multi_reduction <add>, %177, %cst_86 [1, 2] : vector<1x1x16xf32> to vector<1xf32>
      %179 = vector.shape_cast %178 : vector<1xf32> to vector<1x1x1xf32>
      %180 = vector.extract %179[0, 0, 0] : f32 from vector<1x1x1xf32>
      %181 = arith.addf %145, %180 : f32
      %cst_87 = arith.constant 5.000000e-01 : f32
      %182 = arith.mulf %cst_87, %181 : f32
      %cst_88 = arith.constant 1.600000e+01 : f32
      %183 = arith.divf %182, %cst_88 : f32
      %cst_89 = arith.constant 1.600000e+01 : f32
      %184 = arith.divf %155, %cst_89 : f32
      %185 = arith.subf %160, %155 : f32
      %cst_90 = arith.constant 2.400000e+02 : f32
      %186 = arith.divf %185, %cst_90 : f32
      %187 = arith.addf %165, %171 : f32
      %cst_91 = arith.constant 5.000000e-01 : f32
      %188 = arith.mulf %cst_91, %187 : f32
      %cst_92 = arith.constant 5.000000e-01 : f32
      %189 = arith.mulf %cst_92, %172 : f32
      %190 = arith.addf %188, %189 : f32
      %c0_93 = arith.constant 0 : index
      %191 = memref.load %arg4[%c0_93] : memref<8xf32, #tpu.memory_space<smem>>
      memref.store %190, %arg4[%c0_93] : memref<8xf32, #tpu.memory_space<smem>>
      %c1 = arith.constant 1 : index
      %192 = memref.load %arg4[%c1] : memref<8xf32, #tpu.memory_space<smem>>
      memref.store %188, %arg4[%c1] : memref<8xf32, #tpu.memory_space<smem>>
      %c2 = arith.constant 2 : index
      %193 = memref.load %arg4[%c2] : memref<8xf32, #tpu.memory_space<smem>>
      memref.store %172, %arg4[%c2] : memref<8xf32, #tpu.memory_space<smem>>
      %c3 = arith.constant 3 : index
      %194 = memref.load %arg4[%c3] : memref<8xf32, #tpu.memory_space<smem>>
      memref.store %165, %arg4[%c3] : memref<8xf32, #tpu.memory_space<smem>>
      %c4 = arith.constant 4 : index
      %195 = memref.load %arg4[%c4] : memref<8xf32, #tpu.memory_space<smem>>
      memref.store %171, %arg4[%c4] : memref<8xf32, #tpu.memory_space<smem>>
      %c5 = arith.constant 5 : index
      %196 = memref.load %arg4[%c5] : memref<8xf32, #tpu.memory_space<smem>>
      memref.store %183, %arg4[%c5] : memref<8xf32, #tpu.memory_space<smem>>
      %c6 = arith.constant 6 : index
      %197 = memref.load %arg4[%c6] : memref<8xf32, #tpu.memory_space<smem>>
      memref.store %184, %arg4[%c6] : memref<8xf32, #tpu.memory_space<smem>>
      %c7 = arith.constant 7 : index
      %198 = memref.load %arg4[%c7] : memref<8xf32, #tpu.memory_space<smem>>
      memref.store %186, %arg4[%c7] : memref<8xf32, #tpu.memory_space<smem>>
    } else {
    }
    return
  }
  func.func @transform_0(%arg0: i32) -> i32 {
    %c0_i32 = arith.constant 0 : i32
    %c0_i32_0 = arith.constant 0 : i32
    return %c0_i32 : i32
  }
  func.func @transform_1(%arg0: i32) -> (i32, i32) {
    %c0_i32 = arith.constant 0 : i32
    %c0_i32_0 = arith.constant 0 : i32
    return %arg0, %c0_i32 : i32, i32
  }
  func.func @transform_2(%arg0: i32) -> (i32, i32) {
    %c0_i32 = arith.constant 0 : i32
    %c0_i32_0 = arith.constant 0 : i32
    %c0_i32_1 = arith.constant 0 : i32
    return %c0_i32, %c0_i32_0 : i32, i32
  }
  func.func @transform_3(%arg0: i32) -> i32 {
    %c0_i32 = arith.constant 0 : i32
    %c0_i32_0 = arith.constant 0 : i32
    return %c0_i32 : i32
  }
}

</mosaic_0001>

<llo_original>
// kernel: tpu_custom_call.1
$region0: #{tpu_custom_call.1}
  #allocation0 [shape = 'u32[]', space=smem, size = 0x4, offset = 0x4, fixed_abs, tag = 'smem constant byte address 0x4 - core index']
  #allocation1 [shape = 'u32[72,128]{1,0:T(1,128)}', space=vmem, size = 0x9000, scoped, tag = 'internal scratch']
  #allocation2 [shape = 'bf16[16,32]{1,0:T(8,128)(2,1)}', space=vmem, size = 0x1000, scoped, tag = 'scratch operand']
  #allocation3 [shape = 'f32[1,16]{1,0:T(1,128)}', space=vmem, size = 0x200, scoped, tag = 'scratch operand']
  #allocation4 [shape = 'f32[1,16]{1,0:T(1,128)}', space=vmem, size = 0x200, scoped, tag = 'scratch operand']
  #allocation5 [shape = 's32[1,16]{1,0:T(1,128)}', space=vmem, size = 0x200, scoped, tag = 'scratch operand']
  #allocation6 [shape = 'f32[1,1]{1,0:T(1,128)}', space=vmem, size = 0x200, scoped, tag = 'scratch operand']
  #allocation7 [shape = 'f32[1,1]{1,0:T(1,128)}', space=vmem, size = 0x200, scoped, tag = 'scratch operand']
  #allocation8 [shape = 'f32[1,1]{1,0:T(1,128)}', space=vmem, size = 0x200, scoped, tag = 'scratch operand']
  #allocation9 [shape = 'f32[1,1]{1,0:T(1,128)}', space=vmem, size = 0x200, scoped, tag = 'scratch operand']
  #allocation10 [shape = 'f32[1,1]{1,0:T(1,128)}', space=vmem, size = 0x200, scoped, tag = 'scratch operand']
  #allocation11 [shape = 'f32[1]{0:T(128)S(6)}', space=smem, size = 0x200, scoped, tag = 'scoped memory for tpu_custom_call.1']
  %s0 = inlined_call_operand.<no memory space> [shape: f32[1], index: 0, kind: input, shape index: {}]
  %s1 = inlined_call_operand.hbm [shape: f32[16,32], index: 1, kind: input, shape index: {}]
  %s2 = inlined_call_operand.hbm [shape: f32[16,32], index: 2, kind: input, shape index: {}]
  %s3 = inlined_call_operand.hbm [shape: f32[8], index: 3, kind: output, shape index: {}]
  %s4 = sld [smem:[#allocation0]]
  $region38: #{tpu_custom_call.1} parent=0
    _
  %s6 = ssub.s32 1, %s4
  %s7 = scalar_select 0, %s6, %s4
  %8 = sst [smem:[#allocation11]] %s0
  $region1: #{tpu_custom_call.1} parent=0
    #allocation12 [shape = 'u8[8192]{0}', space=vmem, size = 0x2000, scoped, tag = 'input window, operand 1, single buffered']
    #allocation13 [shape = 's32[1]{0}', space=sflag, size = 0x4, scoped, tag = 'scoped memory for tpu_custom_call.1']
    #allocation14 [shape = 's32[1]{0}', space=sflag, size = 0x4, scoped, tag = 'scoped memory for tpu_custom_call.1']
    #allocation15 [shape = 'u8[8192]{0}', space=vmem, size = 0x2000, scoped, tag = 'input window, operand 2, single buffered']
    #allocation16 [shape = 's32[1]{0}', space=sflag, size = 0x4, scoped, tag = 'scoped memory for tpu_custom_call.1']
    #allocation17 [shape = 'u8[512]{0}', space=smem, size = 0x200, scoped, tag = 'output window, operand 0, single buffered']
    %9 = vsyncpa [#allocation13], 0
    %10 = vsyncpa [#allocation16], 0
    %11 = vsyncpa [#allocation14], 0
    // Predicated region
    $region2: #{tpu_custom_call.1} parent=1 // pred_check
      _
    $region3: #{tpu_custom_call.1} parent=1 // pred_check_branch
      %13 = sbr.rel (0) target = $region5
    $region4: #{tpu_custom_call.1} parent=1 // pred_region
      _
    $region5: #{tpu_custom_call.1} parent=1 // pred_fallthru
      _
    // Predicated region
    $region6: #{tpu_custom_call.1} parent=1 // pred_check
      _
    $region7: #{tpu_custom_call.1} parent=1 // pred_check_branch
      %15 = sbr.rel (0) target = $region9
    $region8: #{tpu_custom_call.1} parent=1 // pred_region
      %17 = vsyncadd [#allocation13], 0
      %s18 = sshll.u32 %s1, 4
      %s19 = int_to_ptr.hbm [resolvable:$true] %s18
      %s20 = sshll.u32 [#allocation12], 4
      %s21 = int_to_ptr.vmem [resolvable:$true] %s20
      %26 = dma.hbm_to_vmem [thread:$0]  %s19, 256, %s21, [#allocation13], 128, 128, 8
    $region9: #{tpu_custom_call.1} parent=1 // pred_fallthru
      _
    // Predicated region
    $region10: #{tpu_custom_call.1} parent=1 // pred_check
      _
    $region11: #{tpu_custom_call.1} parent=1 // pred_check_branch
      %28 = sbr.rel (0) target = $region13
    $region12: #{tpu_custom_call.1} parent=1 // pred_region
      %30 = vsyncadd [#allocation16], 0
      %s31 = sshll.u32 %s2, 4
      %s32 = int_to_ptr.hbm [resolvable:$true] %s31
      %s33 = sshll.u32 [#allocation15], 4
      %s34 = int_to_ptr.vmem [resolvable:$true] %s33
      %39 = dma.hbm_to_vmem [thread:$0]  %s32, 256, %s34, [#allocation16], 128, 128, 8
    $region13: #{tpu_custom_call.1} parent=1 // pred_fallthru
      _
    // Predicated region
    $region14: #{tpu_custom_call.1} parent=1 // pred_check
      _
    $region15: #{tpu_custom_call.1} parent=1 // pred_check_branch
      %41 = sbr.rel (0) target = $region17
    $region16: #{tpu_custom_call.1} parent=1 // pred_region
      %43 = dma.done [#allocation13], 256
    $region17: #{tpu_custom_call.1} parent=1 // pred_fallthru
      _
    // Predicated region
    $region18: #{tpu_custom_call.1} parent=1 // pred_check
      _
    $region19: #{tpu_custom_call.1} parent=1 // pred_check_branch
      %45 = sbr.rel (0) target = $region21
    $region20: #{tpu_custom_call.1} parent=1 // pred_region
      %47 = dma.done [#allocation16], 256
    $region21: #{tpu_custom_call.1} parent=1 // pred_fallthru
      _
    %s49 = sld [smem:[#allocation11]]
    %v50 = vstv %s49
    %v51 = vrcp.pop %v50
    %v52 = vmul.f32 %v50, %v51
    %v53 = vsub.f32 1.0, %v52
    %v54 = vmul.f32 %v51, %v53
    %v55 = vadd.f32 %v51, %v54
    %vm56 = vweird.f32 %v50
    %vm57 = vweird.f32 %v51
    %vm58 = vmor %vm56, %vm57
    %v59 = vsel %vm58, %v51, %v55
    %v60 = vand.u32 2147483647, %v50
    %vm61 = vcmp.eq.f32.partialorder %v60, 8.507059e+37
    %v62 = vand.u32 %v50, 2147483648
    %v63 = vor.u32 1.1754944e-38, %v62
    %v64 = vsel %vm61, %v63, %v59
    %s65 = vtos %v64
    %p66 = scmp.eq.s32.totalorder 0, 0
    // Predicated region
    $region22: #{tpu_custom_call.1} parent=1 // pred_check
      %p67 = pneg %p66
    $region23: #{tpu_custom_call.1} parent=1 // pred_check_branch
      %69 = sbr.rel (%p67) target = $region25
    $region24: #{tpu_custom_call.1} parent=1 // pred_region
      %v70 = vld [vmem:[#allocation15] sm:$0xff]
      %v71 = vld [vmem:[#allocation15 + $0x8] sm:$0xff]
      %v72 = vmul.f32 %v70, %v70
      %v73 = vmul.f32 %v71, %v71
      %vm74 = vcmask 261120
      %v75 = vsel %vm74, %v72, 0.0
      %76 = vadd.xlane.f32.xlu0 %v75
      %v77 = vpop.xlane.xlu0 %76
      %v78 = vsel %vm74, %v73, 0.0
      %79 = vadd.xlane.f32.xlu0 %v78
      %v80 = vpop.xlane.xlu0 %79
      %v81 = vrsqrt.pop %v77
      %v82 = vmul.f32 %v81, %v77
      %v83 = vmul.f32 %v82, %v81
      %v84 = vmul.f32 0.5, %v83
      %v85 = vsub.f32 1.5, %v84
      %v86 = vmul.f32 %v81, %v85
      %v87 = vmul.f32 %v77, %v86
      %vm88 = vcmp.eq.f32.partialorder %v77, inf
      %v89 = vsel %vm88, %v77, %v87
      %vm90 = vcmp.eq.f32.partialorder %v77, 0.0
      %v91 = vand.u32 %v77, 2147483648
      %v92 = vsel %vm90, %v91, %v89
      %v93 = vrsqrt.pop %v80
      %v94 = vmul.f32 %v93, %v80
      %v95 = vmul.f32 %v94, %v93
      %v96 = vmul.f32 0.5, %v95
      %v97 = vsub.f32 1.5, %v96
      %v98 = vmul.f32 %v93, %v97
      %v99 = vmul.f32 %v80, %v98
      %vm100 = vcmp.eq.f32.partialorder %v80, inf
      %v101 = vsel %vm100, %v80, %v99
      %vm102 = vcmp.eq.f32.partialorder %v80, 0.0
      %v103 = vand.u32 %v80, 2147483648
      %v104 = vsel %vm102, %v103, %v101
      %v105 = vmax.f32 %v92, 1e-12
      %v106 = vmax.f32 %v104, 1e-12
      %v107 = vrcp.pop %v105
      %v108 = vmul.f32 %v105, %v107
      %v109 = vsub.f32 1.0, %v108
      %v110 = vmul.f32 %v107, %v109
      %v111 = vadd.f32 %v107, %v110
      %vm112 = vweird.f32 %v105
      %vm113 = vweird.f32 %v107
      %vm114 = vmor %vm112, %vm113
      %v115 = vsel %vm114, %v107, %v111
      %v116 = vand.u32 2147483647, %v105
      %vm117 = vcmp.eq.f32.partialorder %v116, 8.507059e+37
      %v118 = vand.u32 %v105, 2147483648
      %v119 = vor.u32 1.1754944e-38, %v118
      %v120 = vsel %vm117, %v119, %v115
      %v121 = vmul.f32 1.0, %v120
      %v122 = vrcp.pop %v106
      %v123 = vmul.f32 %v106, %v122
      %v124 = vsub.f32 1.0, %v123
      %v125 = vmul.f32 %v122, %v124
      %v126 = vadd.f32 %v122, %v125
      %vm127 = vweird.f32 %v106
      %vm128 = vweird.f32 %v122
      %vm129 = vmor %vm127, %vm128
      %v130 = vsel %vm129, %v122, %v126
      %v131 = vand.u32 2147483647, %v106
      %vm132 = vcmp.eq.f32.partialorder %v131, 8.507059e+37
      %v133 = vand.u32 %v106, 2147483648
      %v134 = vor.u32 1.1754944e-38, %v133
      %v135 = vsel %vm132, %v134, %v130
      %v136 = vmul.f32 1.0, %v135
      %v137 = vmul.f32 %v70, %v121
      %v138 = vmul.f32 %v71, %v136
      %v139 = vpack.c.bf16 %v137, %v137
      %v140 = vpack.c.bf16 %v138, %v138
      %vm141 = vcmask 257024
      %142 = vst.msk [vmem:[#allocation2] sm:$0xf] %vm141, %v139
      %143 = vst.msk [vmem:[#allocation2 + $0x4] sm:$0xf] %vm141, %v140
      %vm144 = vcmask 122880
      %145 = vst.msk [vmem:[#allocation3] sm:$0x1] %vm144, 0.0
      %146 = vst.msk [vmem:[#allocation4] sm:$0x1] %vm144, -inf
      %147 = vst.msk [vmem:[#allocation5] sm:$0x1] %vm144, 0
      %vm148 = vcmask 0
      %149 = vst.msk [vmem:[#allocation6] sm:$0x1] %vm148, 0.0
      %150 = vst.msk [vmem:[#allocation7] sm:$0x1] %vm148, 0.0
      %151 = vst.msk [vmem:[#allocation8] sm:$0x1] %vm148, 0.0
      %152 = vst.msk [vmem:[#allocation9] sm:$0x1] %vm148, 0.0
      %153 = vst.msk [vmem:[#allocation10] sm:$0x1] %vm148, 0.0
    $region25: #{tpu_custom_call.1} parent=1 // pred_fallthru
      _
    %s154 = smul.u32 0, 16
    %v155 = vld [vmem:[#allocation12] sm:$0xff]
    %v156 = vld [vmem:[#allocation12 + $0x8] sm:$0xff]
    %v157 = vmul.f32 %v155, %v155
    %v158 = vmul.f32 %v156, %v156
    %vm159 = vcmask 261120
    %v160 = vsel %vm159, %v157, 0.0
    %161 = vadd.xlane.f32.xlu0 %v160
    %v162 = vpop.xlane.xlu0 %161
    %v163 = vsel %vm159, %v158, 0.0
    %164 = vadd.xlane.f32.xlu0 %v163
    %v165 = vpop.xlane.xlu0 %164
    %v166 = vrsqrt.pop %v162
    %v167 = vmul.f32 %v166, %v162
    %v168 = vmul.f32 %v167, %v166
    %v169 = vmul.f32 0.5, %v168
    %v170 = vsub.f32 1.5, %v169
    %v171 = vmul.f32 %v166, %v170
    %v172 = vmul.f32 %v162, %v171
    %vm173 = vcmp.eq.f32.partialorder %v162, inf
    %v174 = vsel %vm173, %v162, %v172
    %vm175 = vcmp.eq.f32.partialorder %v162, 0.0
    %v176 = vand.u32 %v162, 2147483648
    %v177 = vsel %vm175, %v176, %v174
    %v178 = vrsqrt.pop %v165
    %v179 = vmul.f32 %v178, %v165
    %v180 = vmul.f32 %v179, %v178
    %v181 = vmul.f32 0.5, %v180
    %v182 = vsub.f32 1.5, %v181
    %v183 = vmul.f32 %v178, %v182
    %v184 = vmul.f32 %v165, %v183
    %vm185 = vcmp.eq.f32.partialorder %v165, inf
    %v186 = vsel %vm185, %v165, %v184
    %vm187 = vcmp.eq.f32.partialorder %v165, 0.0
    %v188 = vand.u32 %v165, 2147483648
    %v189 = vsel %vm187, %v188, %v186
    %v190 = vmax.f32 %v177, 1e-12
    %v191 = vmax.f32 %v189, 1e-12
    %v192 = vrcp.pop %v190
    %v193 = vmul.f32 %v190, %v192
    %v194 = vsub.f32 1.0, %v193
    %v195 = vmul.f32 %v192, %v194
    %v196 = vadd.f32 %v192, %v195
    %vm197 = vweird.f32 %v190
    %vm198 = vweird.f32 %v192
    %vm199 = vmor %vm197, %vm198
    %v200 = vsel %vm199, %v192, %v196
    %v201 = vand.u32 2147483647, %v190
    %vm202 = vcmp.eq.f32.partialorder %v201, 8.507059e+37
    %v203 = vand.u32 %v190, 2147483648
    %v204 = vor.u32 1.1754944e-38, %v203
    %v205 = vsel %vm202, %v204, %v200
    %v206 = vmul.f32 1.0, %v205
    %v207 = vrcp.pop %v191
    %v208 = vmul.f32 %v191, %v207
    %v209 = vsub.f32 1.0, %v208
    %v210 = vmul.f32 %v207, %v209
    %v211 = vadd.f32 %v207, %v210
    %vm212 = vweird.f32 %v191
    %vm213 = vweird.f32 %v207
    %vm214 = vmor %vm212, %vm213
    %v215 = vsel %vm214, %v207, %v211
    %v216 = vand.u32 2147483647, %v191
    %vm217 = vcmp.eq.f32.partialorder %v216, 8.507059e+37
    %v218 = vand.u32 %v191, 2147483648
    %v219 = vor.u32 1.1754944e-38, %v218
    %v220 = vsel %vm217, %v219, %v215
    %v221 = vmul.f32 1.0, %v220
    %v222 = vmul.f32 %v155, %v206
    %v223 = vmul.f32 %v156, %v221
    %v224 = vpack.c.bf16 %v223, %v222
    %v225 = vld [vmem:[#allocation2] sm:$0xf]
    %v226 = vld [vmem:[#allocation2 + $0x4] sm:$0xf]
    %v229 = vunpack.c.l.b16 %v225
    %v230 = vunpack.c.l.b16 %v226
    %v231 = vpack.c.b16 %v230, %v229
    %v233 = vsel %vm159, %v224, 0
    %v236 = vsel %vm159, %v231, 0
    %238 = vmatpush.bf16.xpose.msra.mxu0 0
    %239 = vmatpush.bf16.xpose.msra.mxu0 0
    %240 = vmatpush.bf16.xpose.msra.mxu0 0
    %241 = vmatpush.bf16.xpose.msra.mxu0 0
    %242 = vmatpush.bf16.xpose.msra.mxu0 0
    %243 = vmatpush.bf16.xpose.msra.mxu0 0
    %244 = vmatpush.bf16.xpose.msra.mxu0 0
    %245 = vmatpush.bf16.xpose.msra.mxu0 %v236
    %246 = vmatmul.bf16.gmra.mxu0 %v233
    %v247 = vpop.f32.mrf.mxu0
    %v248 = vadd.f32 0.0, %v247
    %v249 = vpop.f32.mrf.mxu0
    %v250 = vadd.f32 0.0, %v249
    %251 = vdwg.mxu0
    %v252 = vstv %s65
    %v253 = vmul.f32 %v248, %v252
    %v254 = vmul.f32 %v250, %v252
    %s255 = scalar_lea.vmem [#allocation15], %s154
    %v256 = vld [vmem:[%s255] sm:$0xff]
    %v257 = vld [vmem:[%s255 + $0x8] sm:$0xff]
    %v258 = vmul.f32 %v256, %v256
    %v259 = vmul.f32 %v257, %v257
    %v260 = vsel %vm159, %v258, 0.0
    %261 = vadd.xlane.f32.xlu0 %v260
    %v262 = vpop.xlane.xlu0 %261
    %v263 = vsel %vm159, %v259, 0.0
    %264 = vadd.xlane.f32.xlu0 %v263
    %v265 = vpop.xlane.xlu0 %264
    %v266 = vrsqrt.pop %v262
    %v267 = vmul.f32 %v266, %v262
    %v268 = vmul.f32 %v267, %v266
    %v269 = vmul.f32 0.5, %v268
    %v270 = vsub.f32 1.5, %v269
    %v271 = vmul.f32 %v266, %v270
    %v272 = vmul.f32 %v262, %v271
    %vm273 = vcmp.eq.f32.partialorder %v262, inf
    %v274 = vsel %vm273, %v262, %v272
    %vm275 = vcmp.eq.f32.partialorder %v262, 0.0
    %v276 = vand.u32 %v262, 2147483648
    %v277 = vsel %vm275, %v276, %v274
    %v278 = vrsqrt.pop %v265
    %v279 = vmul.f32 %v278, %v265
    %v280 = vmul.f32 %v279, %v278
    %v281 = vmul.f32 0.5, %v280
    %v282 = vsub.f32 1.5, %v281
    %v283 = vmul.f32 %v278, %v282
    %v284 = vmul.f32 %v265, %v283
    %vm285 = vcmp.eq.f32.partialorder %v265, inf
    %v286 = vsel %vm285, %v265, %v284
    %vm287 = vcmp.eq.f32.partialorder %v265, 0.0
    %v288 = vand.u32 %v265, 2147483648
    %v289 = vsel %vm287, %v288, %v286
    %v290 = vmax.f32 %v277, 1e-12
    %v291 = vmax.f32 %v289, 1e-12
    %v292 = vrcp.pop %v290
    %v293 = vmul.f32 %v290, %v292
    %v294 = vsub.f32 1.0, %v293
    %v295 = vmul.f32 %v292, %v294
    %v296 = vadd.f32 %v292, %v295
    %vm297 = vweird.f32 %v290
    %vm298 = vweird.f32 %v292
    %vm299 = vmor %vm297, %vm298
    %v300 = vsel %vm299, %v292, %v296
    %v301 = vand.u32 2147483647, %v290
    %vm302 = vcmp.eq.f32.partialorder %v301, 8.507059e+37
    %v303 = vand.u32 %v290, 2147483648
    %v304 = vor.u32 1.1754944e-38, %v303
    %v305 = vsel %vm302, %v304, %v300
    %v306 = vmul.f32 1.0, %v305
    %v307 = vrcp.pop %v291
    %v308 = vmul.f32 %v291, %v307
    %v309 = vsub.f32 1.0, %v308
    %v310 = vmul.f32 %v307, %v309
    %v311 = vadd.f32 %v307, %v310
    %vm312 = vweird.f32 %v291
    %vm313 = vweird.f32 %v307
    %vm314 = vmor %vm312, %vm313
    %v315 = vsel %vm314, %v307, %v311
    %v316 = vand.u32 2147483647, %v291
    %vm317 = vcmp.eq.f32.partialorder %v316, 8.507059e+37
    %v318 = vand.u32 %v291, 2147483648
    %v319 = vor.u32 1.1754944e-38, %v318
    %v320 = vsel %vm317, %v319, %v315
    %v321 = vmul.f32 1.0, %v320
    %v322 = vmul.f32 %v256, %v306
    %v323 = vmul.f32 %v257, %v321
    %v324 = vmul.f32 %v222, %v322
    %v325 = vmul.f32 %v223, %v323
    %v326 = vsel %vm159, %v324, 0.0
    %327 = vadd.xlane.f32.xlu0 %v326
    %v328 = vpop.xlane.xlu0 %327
    %v329 = vsel %vm159, %v325, 0.0
    %330 = vadd.xlane.f32.xlu0 %v329
    %v331 = vpop.xlane.xlu0 %330
    %v332 = vmul.f32 %v328, %v252
    %v333 = vmul.f32 %v331, %v252
    %v334 = vsub.f32 %v222, %v322
    %v335 = vsub.f32 %v223, %v323
    %v336 = vmul.f32 %v334, %v334
    %v337 = vmul.f32 %v335, %v335
    %v338 = vsel %vm159, %v336, 0.0
    %v339 = vsel %vm159, %v337, 0.0
    %v340 = vadd.f32 %v338, %v339
    %341 = vadd.xlane.f32.xlu0 %v340
    %v342 = vpop.xlane.xlu0 %341
    %v343 = vrot.slane %v342, 4
    %v344 = vadd.f32 %v342, %v343
    %v345 = vrot.slane %v344, 2
    %v346 = vadd.f32 %v344, %v345
    %v347 = vrot.slane %v346, 1
    %v348 = vadd.f32 %v346, %v347
    %s349 = vtos %v348
    %v350 = vstv %s349
    %v351 = vsub.f32 %v253, %v252
    %v352 = vsub.f32 %v254, %v252
    %v353 = vmul.f32 %v351, 1.442695
    %v354 = vpow.pop %v353
    %v355 = vmul.f32 %v352, 1.442695
    %v356 = vpow.pop %v355
    %vm357 = vcmask 130048
    %v358 = vsel %vm357, %v354, 0.0
    %359 = vadd.xlane.f32.xlu0 %v358
    %v360 = vpop.xlane.xlu0 %359
    %v361 = vsel %vm357, %v356, 0.0
    %362 = vadd.xlane.f32.xlu0 %v361
    %v363 = vpop.xlane.xlu0 %362
    %v364 = vlog2.pop %v360
    %v365 = vmul.f32 %v364, 0.6931472
    %v366 = vlog2.pop %v363
    %v367 = vmul.f32 %v366, 0.6931472
    %v368 = vadd.f32 %v252, %v365
    %v369 = vadd.f32 %v252, %v367
    %v370 = vld [vmem:[#allocation3] sm:$0x1]
    %v371 = vadd.f32 %v358, %v361
    %v372 = vrot.slane %v371, 4
    %v373 = vadd.f32 %v371, %v372
    %v374 = vrot.slane %v373, 2
    %v375 = vadd.f32 %v373, %v374
    %v376 = vrot.slane %v375, 1
    %v377 = vadd.f32 %v375, %v376
    %v378 = vadd.f32 %v370, %v377
    %vm379 = vcmask 122880
    %380 = vst.msk [vmem:[#allocation3] sm:$0x1] %vm379, %v378
    %v381 = vlaneseq
    %v382 = vand.u32 %v381, 127
    %v383 = vlaneseq
    %v384 = vshrl.u32 %v383, 7
    %v385 = vadd.s32 %v384, 8
    %v386 = vsel %vm357, %v253, -inf
    %387 = vmax.xlane.f32.xlu0 %v386
    %v388 = vpop.xlane.xlu0 %387
    %v389 = vsel %vm357, %v254, -inf
    %390 = vmax.xlane.f32.xlu0 %v389
    %v391 = vpop.xlane.xlu0 %390
    %vm392 = vcmp.eq.f32.partialorder %v253, %v388
    %vm393 = vcmp.eq.f32.partialorder %v254, %v391
    %v394 = vsel %vm392, %v382, 16
    %v395 = vsel %vm393, %v382, 16
    %v396 = vsel %vm357, %v394, 2147483647
    %v397 = vand.u32 %v396, 65535
    %v398 = vshra.s32 %v396, 16
    %v399 = vcvt.s32.f32 %v397
    %v400 = vcvt.s32.f32 %v398
    %401 = vmin.xlane.f32.xlu0 %v400
    %v402 = vpop.xlane.xlu0 %401
    %vm403 = vcmp.eq.f32.partialorder %v400, %v402
    %v404 = vsel %vm403, %v399, inf
    %405 = vmin.xlane.f32.xlu0 %v404
    %v406 = vpop.xlane.xlu0 %405
    %v407 = vcvt.f32.s32 %v406
    %v408 = vcvt.f32.s32 %v402
    %v409 = vshll.u32 %v408, 16
    %v410 = vadd.s32 %v409, %v407
    %v411 = vsel %vm357, %v395, 2147483647
    %v412 = vand.u32 %v411, 65535
    %v413 = vshra.s32 %v411, 16
    %v414 = vcvt.s32.f32 %v412
    %v415 = vcvt.s32.f32 %v413
    %416 = vmin.xlane.f32.xlu0 %v415
    %v417 = vpop.xlane.xlu0 %416
    %vm418 = vcmp.eq.f32.partialorder %v415, %v417
    %v419 = vsel %vm418, %v414, inf
    %420 = vmin.xlane.f32.xlu0 %v419
    %v421 = vpop.xlane.xlu0 %420
    %v422 = vcvt.f32.s32 %v421
    %v423 = vcvt.f32.s32 %v417
    %v424 = vshll.u32 %v423, 16
    %v425 = vadd.s32 %v424, %v422
    %v426 = vstv %s154
    %v427 = vadd.s32 %v384, %v426
    %v428 = vadd.s32 %v385, %v426
    %vm429 = vcmp.eq.s32.totalorder %v410, %v427
    %vm430 = vcmp.eq.s32.totalorder %v425, %v428
    %v431 = vsel %vm429, 1, 0
    %v432 = vsel %vm430, 1, 0
    %v433 = vcvt.s32.f32 %v431
    %v434 = vcvt.s32.f32 %v432
    %vm435 = vcmask 7168
    %v436 = vsel %vm435, %v433, 0.0
    %v437 = vsel %vm435, %v434, 0.0
    %v438 = vadd.f32 %v436, %v437
    %439 = vadd.xlane.f32.xlu0 %v438
    %v440 = vpop.xlane.xlu0 %439
    %v441 = vrot.slane %v440, 4
    %v442 = vadd.f32 %v440, %v441
    %v443 = vrot.slane %v442, 2
    %v444 = vadd.f32 %v442, %v443
    %v445 = vrot.slane %v444, 1
    %v446 = vadd.f32 %v444, %v445
    %s447 = vtos %v446
    %v448 = vstv %s447
    %v449 = vmax.f32 %v386, %v389
    %v450 = vrot.slane %v449, 4
    %v451 = vmax.f32 %v449, %v450
    %v452 = vrot.slane %v451, 2
    %v453 = vmax.f32 %v451, %v452
    %v454 = vrot.slane %v453, 1
    %v455 = vmax.f32 %v453, %v454
    %vm456 = vcmp.eq.f32.partialorder %v253, %v455
    %vm457 = vcmp.eq.f32.partialorder %v254, %v455
    %v458 = vsel %vm456, %v384, 16
    %v459 = vsel %vm457, %v385, 16
    %v460 = vsel %vm357, %v458, 2147483647
    %v461 = vsel %vm357, %v459, 2147483647
    %vm462 = vcmp.lt.s32.totalorder %v460, %v461
    %v463 = vsel %vm462, %v460, %v461
    %v464 = vrot.slane %v463, 4
    %vm465 = vcmp.lt.s32.totalorder %v463, %v464
    %v466 = vsel %vm465, %v463, %v464
    %v467 = vrot.slane %v466, 2
    %vm468 = vcmp.lt.s32.totalorder %v466, %v467
    %v469 = vsel %vm468, %v466, %v467
    %v470 = vrot.slane %v469, 1
    %vm471 = vcmp.lt.s32.totalorder %v469, %v470
    %v472 = vsel %vm471, %v469, %v470
    %v473 = vadd.s32 %v472, %v426
    %v474 = vld [vmem:[#allocation4] sm:$0x1]
    %vm475 = vcmp.gt.f32.partialorder %v455, %v474
    %v476 = vld [vmem:[#allocation5] sm:$0x1]
    %v477 = vsel %vm475, %v473, %v476
    %478 = vst.msk [vmem:[#allocation5] sm:$0x1] %vm379, %v477
    %v479 = vld [vmem:[#allocation4] sm:$0x1]
    %v480 = vmax.f32 %v455, %v479
    %481 = vst.msk [vmem:[#allocation4] sm:$0x1] %vm379, %v480
    %v482 = vld [vmem:[#allocation6] sm:$0x1]
    %v483 = vsub.f32 %v368, %v332
    %v484 = vsub.f32 %v369, %v333
    %v485 = vsel %vm435, %v483, 0.0
    %v486 = vsel %vm435, %v484, 0.0
    %v487 = vadd.f32 %v485, %v486
    %488 = vadd.xlane.f32.xlu0 %v487
    %v489 = vpop.xlane.xlu0 %488
    %v490 = vrot.slane %v489, 4
    %v491 = vadd.f32 %v489, %v490
    %v492 = vrot.slane %v491, 2
    %v493 = vadd.f32 %v491, %v492
    %v494 = vrot.slane %v493, 1
    %v495 = vadd.f32 %v493, %v494
    %s496 = vtos %v495
    %v497 = vstv %s496
    %v498 = vadd.f32 %v482, %v497
    %vm499 = vcmask 0
    %500 = vst.msk [vmem:[#allocation6] sm:$0x1] %vm499, %v498
    %v501 = vld [vmem:[#allocation7] sm:$0x1]
    %v502 = vadd.f32 %v501, %v448
    %503 = vst.msk [vmem:[#allocation7] sm:$0x1] %vm499, %v502
    %v504 = vld [vmem:[#allocation8] sm:$0x1]
    %v505 = vadd.f32 %v504, %v350
    %506 = vst.msk [vmem:[#allocation8] sm:$0x1] %vm499, %v505
    %v507 = vld [vmem:[#allocation9] sm:$0x1]
    %v508 = vsel %vm435, %v332, 0.0
    %v509 = vsel %vm435, %v333, 0.0
    %v510 = vadd.f32 %v508, %v509
    %511 = vadd.xlane.f32.xlu0 %v510
    %v512 = vpop.xlane.xlu0 %511
    %v513 = vrot.slane %v512, 4
    %v514 = vadd.f32 %v512, %v513
    %v515 = vrot.slane %v514, 2
    %v516 = vadd.f32 %v514, %v515
    %v517 = vrot.slane %v516, 1
    %v518 = vadd.f32 %v516, %v517
    %s519 = vtos %v518
    %v520 = vstv %s519
    %v521 = vadd.f32 %v507, %v520
    %522 = vst.msk [vmem:[#allocation9] sm:$0x1] %vm499, %v521
    %v523 = vld [vmem:[#allocation10] sm:$0x1]
    %v524 = vsel %vm357, %v253, 0.0
    %v525 = vsel %vm357, %v254, 0.0
    %v526 = vadd.f32 %v524, %v525
    %527 = vadd.xlane.f32.xlu0 %v526
    %v528 = vpop.xlane.xlu0 %527
    %v529 = vrot.slane %v528, 4
    %v530 = vadd.f32 %v528, %v529
    %v531 = vrot.slane %v530, 2
    %v532 = vadd.f32 %v530, %v531
    %v533 = vrot.slane %v532, 1
    %v534 = vadd.f32 %v532, %v533
    %s535 = vtos %v534
    %v536 = vstv %s535
    %v537 = vadd.f32 %v523, %v536
    %538 = vst.msk [vmem:[#allocation10] sm:$0x1] %vm499, %v537
    // Predicated region
    $region26: #{tpu_custom_call.1} parent=1 // pred_check
      %p539 = pneg %p66
    $region27: #{tpu_custom_call.1} parent=1 // pred_check_branch
      %541 = sbr.rel (%p539) target = $region29
    $region28: #{tpu_custom_call.1} parent=1 // pred_region
      %v542 = vld [vmem:[#allocation6] sm:$0x1]
      %v543 = vadd.f32 %v542, 0.0
      %s544 = vtos %v543
      %v545 = vld [vmem:[#allocation7] sm:$0x1]
      %v546 = vadd.f32 %v545, 0.0
      %s547 = vtos %v546
      %v548 = vld [vmem:[#allocation8] sm:$0x1]
      %v549 = vadd.f32 %v548, 0.0
      %s550 = vtos %v549
      %v551 = vld [vmem:[#allocation9] sm:$0x1]
      %v552 = vadd.f32 %v551, 0.0
      %s553 = vtos %v552
      %v554 = vld [vmem:[#allocation10] sm:$0x1]
      %v555 = vadd.f32 %v554, 0.0
      %s556 = vtos %v555
      %v557 = vld [vmem:[#allocation3] sm:$0x1]
      %v558 = vlog2.pop %v557
      %v559 = vmul.f32 %v558, 0.6931472
      %v560 = vadd.f32 %v252, %v559
      %v561 = vrcp.pop 16.0
      %v562 = vmul.f32 16.0, %v561
      %v563 = vsub.f32 1.0, %v562
      %v564 = vmul.f32 %v561, %v563
      %v565 = vadd.f32 %v561, %v564
      %vm566 = vweird.f32 %v561
      %v567 = vsel %vm566, %v561, %v565
      %s568 = vtos %v567
      %s569 = smul.f32 %s544, %s568
      %v570 = vsel %vm379, %v560, 0.0
      %571 = vadd.xlane.f32.xlu0 %v570
      %v572 = vpop.xlane.xlu0 %571
      %v573 = vrot.slane %v572, 4
      %v574 = vadd.f32 %v572, %v573
      %v575 = vrot.slane %v574, 2
      %v576 = vadd.f32 %v574, %v575
      %v577 = vrot.slane %v576, 1
      %v578 = vadd.f32 %v576, %v577
      %s579 = vtos %v578
      %s580 = ssub.f32 %s579, %s553
      %v581 = vrcp.pop 16.0
      %v582 = vmul.f32 16.0, %v581
      %v583 = vsub.f32 1.0, %v582
      %v584 = vmul.f32 %v581, %v583
      %v585 = vadd.f32 %v581, %v584
      %vm586 = vweird.f32 %v581
      %v587 = vsel %vm586, %v581, %v585
      %s588 = vtos %v587
      %s589 = smul.f32 %s580, %s588
      %v590 = vrcp.pop 512.0
      %v591 = vmul.f32 512.0, %v590
      %v592 = vsub.f32 1.0, %v591
      %v593 = vmul.f32 %v590, %v592
      %v594 = vadd.f32 %v590, %v593
      %vm595 = vweird.f32 %v590
      %v596 = vsel %vm595, %v590, %v594
      %s597 = vtos %v596
      %s598 = smul.f32 %s550, %s597
      %v599 = vld [vmem:[#allocation5] sm:$0x1]
      %vm600 = vcmp.eq.s32.totalorder %v599, %v382
      %v601 = vsel %vm600, 1, 0
      %v602 = vcvt.s32.f32 %v601
      %v603 = vsel %vm379, %v602, 0.0
      %604 = vadd.xlane.f32.xlu0 %v603
      %v605 = vpop.xlane.xlu0 %604
      %v606 = vrot.slane %v605, 4
      %v607 = vadd.f32 %v605, %v606
      %v608 = vrot.slane %v607, 2
      %v609 = vadd.f32 %v607, %v608
      %v610 = vrot.slane %v609, 1
      %v611 = vadd.f32 %v609, %v610
      %s612 = vtos %v611
      %s613 = sadd.f32 %s547, %s612
      %s614 = smul.f32 %s613, 0.5
      %v615 = vrcp.pop 16.0
      %v616 = vmul.f32 16.0, %v615
      %v617 = vsub.f32 1.0, %v616
      %v618 = vmul.f32 %v615, %v617
      %v619 = vadd.f32 %v615, %v618
      %vm620 = vweird.f32 %v615
      %v621 = vsel %vm620, %v615, %v619
      %s622 = vtos %v621
      %s623 = smul.f32 %s614, %s622
      %v624 = vrcp.pop 16.0
      %v625 = vmul.f32 16.0, %v624
      %v626 = vsub.f32 1.0, %v625
      %v627 = vmul.f32 %v624, %v626
      %v628 = vadd.f32 %v624, %v627
      %vm629 = vweird.f32 %v624
      %v630 = vsel %vm629, %v624, %v628
      %s631 = vtos %v630
      %s632 = smul.f32 %s553, %s631
      %s633 = ssub.f32 %s556, %s553
      %v634 = vrcp.pop 240.0
      %v635 = vmul.f32 240.0, %v634
      %v636 = vsub.f32 1.0, %v635
      %v637 = vmul.f32 %v634, %v636
      %v638 = vadd.f32 %v634, %v637
      %vm639 = vweird.f32 %v634
      %v640 = vsel %vm639, %v634, %v638
      %s641 = vtos %v640
      %s642 = smul.f32 %s633, %s641
      %s643 = sadd.f32 %s569, %s589
      %s644 = smul.f32 %s643, 0.5
      %s645 = smul.f32 %s598, 0.5
      %s646 = sadd.f32 %s644, %s645
      %s647 = scalar_lea.smem [#allocation17], 0
      %648 = sst [smem:[%s647]] %s646
      %s649 = scalar_lea.smem [#allocation17], 1
      %650 = sst [smem:[%s649]] %s644
      %s651 = scalar_lea.smem [#allocation17], 2
      %652 = sst [smem:[%s651]] %s598
      %s653 = scalar_lea.smem [#allocation17], 3
      %654 = sst [smem:[%s653]] %s569
      %s655 = scalar_lea.smem [#allocation17], 4
      %656 = sst [smem:[%s655]] %s589
      %s657 = scalar_lea.smem [#allocation17], 5
      %658 = sst [smem:[%s657]] %s623
      %s659 = scalar_lea.smem [#allocation17], 6
      %660 = sst [smem:[%s659]] %s632
      %s661 = scalar_lea.smem [#allocation17], 7
      %662 = sst [smem:[%s661]] %s642
    $region29: #{tpu_custom_call.1} parent=1 // pred_fallthru
      _
    // Predicated region
    $region30: #{tpu_custom_call.1} parent=1 // pred_check
      _
    $region31: #{tpu_custom_call.1} parent=1 // pred_check_branch
      %664 = sbr.rel (0) target = $region33
    $region32: #{tpu_custom_call.1} parent=1 // pred_region
      %666 = vsyncadd [#allocation14], 0
      %s668 = sshll.u32 %s3, 4
      %s669 = int_to_ptr.hbm [resolvable:$true] %s668
      %671 = dma.smem_to_hbm [#allocation17], 16, %s669, [#allocation14]
    $region33: #{tpu_custom_call.1} parent=1 // pred_fallthru
      _
    // Predicated region
    $region34: #{tpu_custom_call.1} parent=1 // pred_check
      _
    $region35: #{tpu_custom_call.1} parent=1 // pred_check_branch
      %673 = sbr.rel (0) target = $region37
    $region36: #{tpu_custom_call.1} parent=1 // pred_region
      %675 = dma.done [#allocation14], 16
    $region37: #{tpu_custom_call.1} parent=1 // pred_fallthru
      _
    %676 = sfence
    %677 = vsyncpa [#allocation13], 1
    %678 = vsyncpa [#allocation16], 1
    %679 = vsyncpa [#allocation14], 1

</llo_original>
